<compile_context>
chip_gen: v7x
topology: tpu7x:2x2x1
jax: 0.10.0
libtpu: 0.0.40
codegen_flags: <defaults>
</compile_context>

<pallas_src>
import math

import jax
import jax.numpy as jnp
from jax.experimental import pallas as pl
from jax.experimental.pallas import tpu as pltpu


def _round_up(x, m):
    return (x + m - 1) // m * m


# ----------------------------------------------------------------------------
# Pallas kernel: one node tile; all V views folded into the matmul M dim.
# ----------------------------------------------------------------------------
def _efgnn_kernel(x_ref, w1_ref, b1_ref, w2_ref, b2_ref, ev_ref, eva_ref):
    V, tn, Fp = x_ref.shape
    Cp = w2_ref.shape[1]

    # layer1: (V*tn, Fp) @ (Fp, Hp) on the MXU, f32 accumulate, tanh.
    x = x_ref[...].reshape(V * tn, Fp)                      # free leading-dim merge
    h = jnp.tanh(
        jnp.dot(x, w1_ref[...], preferred_element_type=jnp.float32)
        + b1_ref[...])                                      # (V*tn, Hp) f32

    # layer2: (V*tn, Hp) @ (Hp, Cp).  Padded class lanes of b2 are -30, so
    # softplus underflows to ~0 there (no explicit lane mask needed).
    z = (jnp.dot(h.astype(jnp.bfloat16), w2_ref[...],
                 preferred_element_type=jnp.float32)
         + b2_ref[...])                                     # (V*tn, Cp) f32

    # softplus, numerically stable: max(z, 0) + log1p(exp(-|z|))
    ev = jnp.maximum(z, 0.0) + jnp.log1p(jnp.exp(-jnp.abs(z)))
    ev3 = ev.reshape(V, tn, Cp)                             # free leading-dim split

    ev_ref[...] = ev3.astype(jnp.bfloat16)                  # dominant HBM write: bf16
    eva_ref[...] = jnp.sum(ev3, axis=0)                     # evidence_a (f32)


# ----------------------------------------------------------------------------
# Wrapper
# ----------------------------------------------------------------------------
def _vmem_limit_bytes():
    cap = 64 * 1024 * 1024                       # conservative: v7x per-TC VMEM
    try:                                         # capability probe only
        info = pltpu.get_tpu_info()
        cap = int(getattr(info, "vmem_capacity_bytes", cap) or cap)
    except Exception:
        pass
    return (cap * 3) // 4                        # 48 MiB on v7x, 96 MiB on v5e/v6e


def _pick_tile_n(N, V, Fp, Hp, Cp, vmem_limit):
    """Largest sublane-aligned node tile whose working set fits ~2/3 of the
    VMEM limit, capped so the grid keeps >= 2 tiles when N allows it."""
    budget = (vmem_limit * 2) // 3
    weight_bytes = 2 * (Fp * Hp * 2 + Hp * 4 + Hp * Cp * 2 + Cp * 4)
    per_row = (
        2 * V * Fp * 2        # X tile (bf16, double-buffered)
        + 2 * V * Cp * 2      # evidence tile (bf16, double-buffered)
        + 2 * Cp * 4          # evidence_a tile (f32, double-buffered)
        + V * Fp * 2          # merged x copy
        + V * Hp * 6          # h (f32) + bf16 cast
        + 2 * V * Cp * 4      # z, ev (f32)
    )
    avail = max(budget - weight_bytes, per_row * 16)
    tile = max(16, (avail // per_row) // 16 * 16)
    tile = min(tile, 2048)
    # keep at least two node tiles when possible (v7x megacore: feed both TCs)
    tile = min(tile, max(16, _round_up((N + 1) // 2, 16)))
    tile = min(tile, _round_up(N, 16))
    return int(tile)


def efgnn_pallas(X, w1, b1, w2, b2, num_class):
    """X: [V, N, F] float32.  Returns (evidence [V,N,C] f32, evidence_a [N,C],
    alpha_a [N,C], u_a [N,1]).

    NOTE: in a real training loop the padded/bf16 Xp below is static across
    iterations and should be prepared once and cached by the caller.
    """
    V, N, F = X.shape
    H = w1.shape[1]
    C = w2.shape[1]

    Fp = _round_up(F, 128)
    Hp = _round_up(H, 128)
    Cp = _round_up(C, 128)

    vmem_limit = _vmem_limit_bytes()
    tile_n = _pick_tile_n(N, V, Fp, Hp, Cp, vmem_limit)
    Np = _round_up(N, tile_n)

    b1 = b1.reshape(1, -1)
    b2 = b2.reshape(1, -1)

    Xp = jnp.pad(X, ((0, 0), (0, Np - N), (0, Fp - F))).astype(jnp.bfloat16)
    w1p = jnp.pad(w1, ((0, Fp - F), (0, Hp - H))).astype(jnp.bfloat16)
    b1p = jnp.pad(b1, ((0, 0), (0, Hp - H))).astype(jnp.float32)
    w2p = jnp.pad(w2, ((0, Hp - H), (0, Cp - C))).astype(jnp.bfloat16)
    # Padded class lanes get a large negative bias so softplus ~= 0 there.
    b2p = jnp.pad(b2.astype(jnp.float32), ((0, 0), (0, Cp - C)),
                  constant_values=-30.0)

    grid = (Np // tile_n,)

    cost = pl.CostEstimate(
        flops=int(2 * V * Np * (Fp * Hp + Hp * Cp)),
        transcendentals=int(V * Np * (Hp + 2 * Cp)),
        bytes_accessed=int(V * Np * Fp * 2 + Fp * Hp * 2 + Hp * Cp * 2
                           + Hp * 4 + Cp * 4
                           + V * Np * Cp * 2 + Np * Cp * 4),
    )

    ev_p, eva_p = pl.pallas_call(
        _efgnn_kernel,
        out_shape=(
            jax.ShapeDtypeStruct((V, Np, Cp), jnp.bfloat16),   # evidence / view
            jax.ShapeDtypeStruct((Np, Cp), jnp.float32),       # evidence_a
        ),
        grid_spec=pltpu.PrefetchScalarGridSpec(
            num_scalar_prefetch=0,
            grid=grid,
            in_specs=[
                pl.BlockSpec((V, tile_n, Fp), lambda i: (0, i, 0)),   # X tile
                pl.BlockSpec((Fp, Hp), lambda i: (0, 0)),             # W1
                pl.BlockSpec((1, Hp), lambda i: (0, 0)),              # b1
                pl.BlockSpec((Hp, Cp), lambda i: (0, 0)),             # W2
                pl.BlockSpec((1, Cp), lambda i: (0, 0)),              # b2
            ],
            out_specs=[
                pl.BlockSpec((V, tile_n, Cp), lambda i: (0, i, 0)),   # evidence
                pl.BlockSpec((tile_n, Cp), lambda i: (i, 0)),         # evidence_a
            ],
        ),
        compiler_params=pltpu.CompilerParams(
            dimension_semantics=("parallel",),
            vmem_limit_bytes=int(vmem_limit)),
        cost_estimate=cost,
    )(Xp, w1p, b1p, w2p, b2p)

    evidence = ev_p[:, :N, :C].astype(jnp.float32)
    evidence_a = eva_p[:N, :C]
    # Evidential bookkeeping on the tiny sliced arrays (fused into the loss).
    alpha_a = evidence_a + 1.0
    S = jnp.sum(evidence_a, axis=1, keepdims=True) + jnp.float32(num_class)
    u_a = jnp.float32(num_class) / S                         # exact divide
    return evidence, evidence_a, alpha_a, u_a


# ----------------------------------------------------------------------------
# Loss glue (plain JAX; not the hot path)
# ----------------------------------------------------------------------------
def ce_loss_per_node(y, alpha, num_class):
    # Evidential (Dirichlet) cross-entropy per node:
    #   sum_k y_k * (digamma(S) - digamma(alpha_k))
    S = jnp.sum(alpha, axis=1, keepdims=True)
    lab = jax.nn.one_hot(y, num_class, dtype=alpha.dtype)
    return jnp.sum(lab * (jax.scipy.special.digamma(S)
                          - jax.scipy.special.digamma(alpha)),
                   axis=1, keepdims=True)


def reg_loss_per_node(y, evidence_a, num_class, kl, dis):
    # TODO(synk): reference `reg_loss` definition was not provided with the
    # module; returning zeros so the aggregate loss reduces to the CE term.
    return jnp.zeros((evidence_a.shape[0], 1), evidence_a.dtype)


def efgnn_forward(params, X, y, mask, num_class, kl=1.0, dis=1.0):
    w1, b1, w2, b2 = params
    evidence, evidence_a, alpha_a, u_a = efgnn_pallas(
        X, w1, b1, w2, b2, num_class)
    per_node = (ce_loss_per_node(y, alpha_a, num_class)
                + reg_loss_per_node(y, evidence_a, num_class, kl, dis))
    # Mean over masked nodes (jit-friendly: no boolean fancy indexing).
    w = mask.astype(per_node.dtype).reshape(-1, 1)
    loss = jnp.sum(per_node * w) / jnp.maximum(jnp.sum(w), 1.0)
    return evidence, evidence_a, u_a, loss


# ----------------------------------------------------------------------------
# Deterministic parameter init (mirrors MLPLayer.reset_parameters:
#   normal_(mean=-stdv, std=stdv) with stdv = 1/sqrt(out_features))
# ----------------------------------------------------------------------------
def init_params(key, nfeat, nhid, num_class):
    k1, k2, k3, k4 = jax.random.split(key, 4)
    stdv1 = 1.0 / math.sqrt(nhid)
    stdv2 = 1.0 / math.sqrt(num_class)
    w1 = -stdv1 + stdv1 * jax.random.normal(k1, (nfeat, nhid), jnp.float32)
    b1 = -stdv1 + stdv1 * jax.random.normal(k2, (1, nhid), jnp.float32)
    w2 = -stdv2 + stdv2 * jax.random.normal(k3, (nhid, num_class), jnp.float32)
    b2 = -stdv2 + stdv2 * jax.random.normal(k4, (1, num_class), jnp.float32)
    return (w1, b1, w2, b2)


def _reference_forward(params, X, num_class):
    w1, b1, w2, b2 = params
    h = jnp.tanh(jnp.einsum("vnf,fh->vnh", X, w1) + b1.reshape(1, 1, -1))
    ev = jax.nn.softplus(jnp.einsum("vnh,hc->vnc", h, w2) + b2.reshape(1, 1, -1))
    ev_a = jnp.sum(ev, axis=0)
    S = jnp.sum(ev_a, axis=1, keepdims=True) + num_class
    u = num_class / S
    return ev, ev_a, u


if __name__ == "__main__":
    # Small shapes: num_hops=2 -> 3 views, N=16 nodes, input_dim=32,
    # hid_dim=32, num_class=4.
    num_hops, num_class = 2, 4
    N, F, H = 16, 32, 32
    V = num_hops + 1

    key = jax.random.PRNGKey(0)
    kx, ky, kp = jax.random.split(key, 3)

    X = jax.random.normal(kx, (V, N, F), jnp.float32)        # stacked views
    y = jax.random.randint(ky, (N,), 0, num_class)
    mask = jnp.arange(N) < (N // 2)                          # train mask

    params = init_params(kp, F, H, num_class)

    evidence, evidence_a, u_a, loss = efgnn_forward(
        params, X, y, mask, num_class, kl=1.0, dis=1.0)
    jax.block_until_ready((evidence, evidence_a, u_a, loss))

    assert evidence.shape == (V, N, num_class)
    assert evidence_a.shape == (N, num_class)
    assert u_a.shape == (N, 1)
    assert bool(jnp.isfinite(loss))

    # Lightweight correctness check vs. a pure-JAX f32 reference
    # (lenient tolerance: bf16 MXU operands + bf16 evidence storage).
    ev_ref, eva_ref, u_ref = _reference_forward(params, X, num_class)
    assert float(jnp.max(jnp.abs(evidence - ev_ref))) < 0.25
    assert float(jnp.max(jnp.abs(u_a - u_ref))) < 0.05

    print("KERNEL_OK")
</pallas_src>

<mosaic_0001>
module attributes {stable_mosaic.version = 11 : i64} {
  func.func @_efgnn_kernel(%arg0: i32, %arg1: memref<3x16x128xbf16, #tpu.memory_space<vmem>>, %arg2: memref<128x128xbf16, #tpu.memory_space<vmem>>, %arg3: memref<1x128xf32, #tpu.memory_space<vmem>>, %arg4: memref<128x128xbf16, #tpu.memory_space<vmem>>, %arg5: memref<1x128xf32, #tpu.memory_space<vmem>>, %arg6: memref<3x16x128xbf16, #tpu.memory_space<vmem>>, %arg7: memref<16x128xf32, #tpu.memory_space<vmem>>) attributes {dimension_semantics = [#tpu.dimension_semantics<parallel>], iteration_bounds = array<i64: 1>, scalar_prefetch = 0 : i64, scratch_operands = 0 : i64, tpu.core_type = #tpu.core_type<tc>, window_params = [{transform_indices = @transform_0, window_bounds = array<i64: 3, 16, 128>}, {pipeline_mode = #tpu.pipeline_mode<synchronous>, transform_indices = @transform_1, window_bounds = array<i64: 128, 128>}, {pipeline_mode = #tpu.pipeline_mode<synchronous>, transform_indices = @transform_2, window_bounds = array<i64: 1, 128>}, {pipeline_mode = #tpu.pipeline_mode<synchronous>, transform_indices = @transform_3, window_bounds = array<i64: 128, 128>}, {pipeline_mode = #tpu.pipeline_mode<synchronous>, transform_indices = @transform_4, window_bounds = array<i64: 1, 128>}, {transform_indices = @transform_5, window_bounds = array<i64: 3, 16, 128>}, {transform_indices = @transform_6, window_bounds = array<i64: 16, 128>}]} {
    %c0 = arith.constant 0 : index
    %c0_0 = arith.constant 0 : index
    %c0_1 = arith.constant 0 : index
    %0 = vector.load %arg1[%c0, %c0_0, %c0_1] : memref<3x16x128xbf16, #tpu.memory_space<vmem>>, vector<3x16x128xbf16>
    %1 = vector.shape_cast %0 : vector<3x16x128xbf16> to vector<48x128xbf16>
    %c0_2 = arith.constant 0 : index
    %c0_3 = arith.constant 0 : index
    %2 = vector.load %arg2[%c0_2, %c0_3] : memref<128x128xbf16, #tpu.memory_space<vmem>>, vector<128x128xbf16>
    %cst = arith.constant dense<0.000000e+00> : vector<48x128xf32>
    %3 = tpu.matmul %1, %2, %cst {dimension_numbers = #tpu.dot_dimension_numbers<[1], [0], [0], [1], [0, 0, 1, 1], [], []>} : vector<48x128xbf16>, vector<128x128xbf16>, vector<48x128xf32> -> vector<48x128xf32>
    %c0_4 = arith.constant 0 : index
    %c0_5 = arith.constant 0 : index
    %4 = vector.load %arg3[%c0_4, %c0_5] : memref<1x128xf32, #tpu.memory_space<vmem>>, vector<1x128xf32>
    %5 = vector.broadcast %4 : vector<1x128xf32> to vector<48x128xf32>
    %6 = arith.addf %3, %5 : vector<48x128xf32>
    %7 = math.tanh %6 : vector<48x128xf32>
    %8 = arith.truncf %7 : vector<48x128xf32> to vector<48x128xbf16>
    %c0_6 = arith.constant 0 : index
    %c0_7 = arith.constant 0 : index
    %9 = vector.load %arg4[%c0_6, %c0_7] : memref<128x128xbf16, #tpu.memory_space<vmem>>, vector<128x128xbf16>
    %cst_8 = arith.constant dense<0.000000e+00> : vector<48x128xf32>
    %10 = tpu.matmul %8, %9, %cst_8 {dimension_numbers = #tpu.dot_dimension_numbers<[1], [0], [0], [1], [0, 0, 1, 1], [], []>} : vector<48x128xbf16>, vector<128x128xbf16>, vector<48x128xf32> -> vector<48x128xf32>
    %c0_9 = arith.constant 0 : index
    %c0_10 = arith.constant 0 : index
    %11 = vector.load %arg5[%c0_9, %c0_10] : memref<1x128xf32, #tpu.memory_space<vmem>>, vector<1x128xf32>
    %12 = vector.broadcast %11 : vector<1x128xf32> to vector<48x128xf32>
    %13 = arith.addf %10, %12 : vector<48x128xf32>
    %cst_11 = arith.constant 0.000000e+00 : f32
    %14 = vector.broadcast %cst_11 : f32 to vector<48x128xf32>
    %15 = arith.maximumf %13, %14 : vector<48x128xf32>
    %16 = math.absf %13 : vector<48x128xf32>
    %cst_12 = arith.constant 0.000000e+00 : f32
    %17 = vector.broadcast %cst_12 : f32 to vector<48x128xf32>
    %18 = arith.subf %17, %16 : vector<48x128xf32>
    %19 = math.exp %18 : vector<48x128xf32>
    %20 = math.log1p %19 : vector<48x128xf32>
    %21 = arith.addf %15, %20 : vector<48x128xf32>
    %22 = vector.shape_cast %21 : vector<48x128xf32> to vector<3x16x128xf32>
    %23 = arith.truncf %22 : vector<3x16x128xf32> to vector<3x16x128xbf16>
    %c0_13 = arith.constant 0 : index
    %c0_14 = arith.constant 0 : index
    %c0_15 = arith.constant 0 : index
    %24 = vector.load %arg6[%c0_13, %c0_14, %c0_15] : memref<3x16x128xbf16, #tpu.memory_space<vmem>>, vector<3x16x128xbf16>
    tpu.vector_store %arg6[%c0_13, %c0_14, %c0_15], %23 {strides = array<i32>} : memref<3x16x128xbf16, #tpu.memory_space<vmem>>, vector<3x16x128xbf16>,
    %cst_16 = arith.constant dense<0.000000e+00> : vector<16x128xf32>
    %25 = vector.multi_reduction <add>, %22, %cst_16 [0] : vector<3x16x128xf32> to vector<16x128xf32>
    %c0_17 = arith.constant 0 : index
    %c0_18 = arith.constant 0 : index
    %26 = vector.load %arg7[%c0_17, %c0_18] : memref<16x128xf32, #tpu.memory_space<vmem>>, vector<16x128xf32>
    tpu.vector_store %arg7[%c0_17, %c0_18], %25 {strides = array<i32>} : memref<16x128xf32, #tpu.memory_space<vmem>>, vector<16x128xf32>,
    return
  }
  func.func @transform_0(%arg0: i32) -> (i32, i32, i32) {
    %c0_i32 = arith.constant 0 : i32
    %c0_i32_0 = arith.constant 0 : i32
    %c0_i32_1 = arith.constant 0 : i32
    return %c0_i32, %arg0, %c0_i32_0 : i32, i32, i32
  }
  func.func @transform_1(%arg0: i32) -> (i32, i32) {
    %c0_i32 = arith.constant 0 : i32
    %c0_i32_0 = arith.constant 0 : i32
    %c0_i32_1 = arith.constant 0 : i32
    return %c0_i32, %c0_i32_0 : i32, i32
  }
  func.func @transform_2(%arg0: i32) -> (i32, i32) {
    %c0_i32 = arith.constant 0 : i32
    %c0_i32_0 = arith.constant 0 : i32
    %c0_i32_1 = arith.constant 0 : i32
    return %c0_i32, %c0_i32_0 : i32, i32
  }
  func.func @transform_3(%arg0: i32) -> (i32, i32) {
    %c0_i32 = arith.constant 0 : i32
    %c0_i32_0 = arith.constant 0 : i32
    %c0_i32_1 = arith.constant 0 : i32
    return %c0_i32, %c0_i32_0 : i32, i32
  }
  func.func @transform_4(%arg0: i32) -> (i32, i32) {
    %c0_i32 = arith.constant 0 : i32
    %c0_i32_0 = arith.constant 0 : i32
    %c0_i32_1 = arith.constant 0 : i32
    return %c0_i32, %c0_i32_0 : i32, i32
  }
  func.func @transform_5(%arg0: i32) -> (i32, i32, i32) {
    %c0_i32 = arith.constant 0 : i32
    %c0_i32_0 = arith.constant 0 : i32
    %c0_i32_1 = arith.constant 0 : i32
    return %c0_i32, %arg0, %c0_i32_0 : i32, i32, i32
  }
  func.func @transform_6(%arg0: i32) -> (i32, i32) {
    %c0_i32 = arith.constant 0 : i32
    %c0_i32_0 = arith.constant 0 : i32
    return %arg0, %c0_i32 : i32, i32
  }
}

</mosaic_0001>

<llo_original>
// kernel: tpu_custom_call.1
$region0: #{tpu_custom_call.1}
  #allocation0 [shape = 'u32[]', space=smem, size = 0x4, offset = 0x4, fixed_abs, tag = 'smem constant byte address 0x4 - core index']
  #allocation1 [shape = 'u32[144,128]{1,0:T(1,128)}', space=vmem, size = 0x12000, scoped, tag = 'internal scratch']
  %s0 = inlined_call_operand.hbm [shape: bf16[3,16,128], index: 0, kind: input, shape index: {}]
  %s1 = inlined_call_operand.hbm [shape: bf16[128,128], index: 1, kind: input, shape index: {}]
  %s2 = inlined_call_operand.vmem [shape: f32[1,128], index: 2, kind: input, shape index: {}]
  %s3 = inlined_call_operand.hbm [shape: bf16[128,128], index: 3, kind: input, shape index: {}]
  %s4 = inlined_call_operand.vmem [shape: f32[1,128], index: 4, kind: input, shape index: {}]
  %s5 = inlined_call_operand.hbm [shape: bf16[3,16,128], index: 5, kind: output, shape index: {0}]
  %s6 = inlined_call_operand.hbm [shape: f32[16,128], index: 6, kind: output, shape index: {1}]
  %7 = xla_tuple %s5, %s6
  %s8 = sld [smem:[#allocation0]]
  $region50: #{tpu_custom_call.1} parent=0
    _
  %s10 = ssub.s32 1, %s8
  %s11 = scalar_select 0, %s10, %s8
  $region1: #{tpu_custom_call.1} parent=0
    #allocation2 [shape = 'u8[12288]{0}', space=vmem, size = 0x3000, scoped, tag = 'input window, operand 0, single buffered']
    #allocation3 [shape = 's32[1]{0}', space=sflag, size = 0x4, scoped, tag = 'scoped memory for tpu_custom_call.1']
    #allocation4 [shape = 's32[1]{0}', space=sflag, size = 0x4, scoped, tag = 'scoped memory for tpu_custom_call.1']
    #allocation5 [shape = 'u8[32768]{0}', space=vmem, size = 0x8000, scoped, tag = 'input window, operand 1, single buffered']
    #allocation6 [shape = 's32[1]{0}', space=sflag, size = 0x4, scoped, tag = 'scoped memory for tpu_custom_call.1']
    #allocation7 [shape = 'u8[32768]{0}', space=vmem, size = 0x8000, scoped, tag = 'input window, operand 3, single buffered']
    #allocation8 [shape = 'u8[12288]{0}', space=vmem, size = 0x3000, scoped, tag = 'output window, operand 0, single buffered']
    #allocation9 [shape = 'u8[8192]{0}', space=vmem, size = 0x2000, scoped, tag = 'output window, operand 1, single buffered']
    #allocation10 [shape = 's32[1]{0}', space=sflag, size = 0x4, scoped, tag = 'scoped memory for tpu_custom_call.1']
    %12 = vsyncpa [#allocation3], 0
    %13 = vsyncpa [#allocation6], 0
    %14 = vsyncpa [#allocation4], 0
    %15 = vsyncpa [#allocation10], 0
    // Predicated region
    $region2: #{tpu_custom_call.1} parent=1 // pred_check
      _
    $region3: #{tpu_custom_call.1} parent=1 // pred_check_branch
      %17 = sbr.rel (0) target = $region5
    $region4: #{tpu_custom_call.1} parent=1 // pred_region
      %s19 = ssub.s32 384, 384
      %20 = vsyncadd [#allocation3], %s19
      %s21 = sshll.u32 [#allocation2], 4
      %s22 = int_to_ptr.vmem [resolvable:$true] %s21
      %27 = dma.hbm_to_vmem [thread:$0]  %s0, 384, %s22, [#allocation3], 64, 64, 4
    $region5: #{tpu_custom_call.1} parent=1 // pred_fallthru
      _
    // Predicated region
    $region6: #{tpu_custom_call.1} parent=1 // pred_check
      _
    $region7: #{tpu_custom_call.1} parent=1 // pred_check_branch
      %29 = sbr.rel (0) target = $region9
    $region8: #{tpu_custom_call.1} parent=1 // pred_region
      %s31 = ssub.s32 1024, 1024
      %32 = vsyncadd [#allocation6], %s31
      %s33 = sshll.u32 [#allocation5], 4
      %s34 = int_to_ptr.vmem [resolvable:$true] %s33
      %39 = dma.hbm_to_vmem [thread:$0]  %s1, 1024, %s34, [#allocation6], 64, 64, 4
    $region9: #{tpu_custom_call.1} parent=1 // pred_fallthru
      _
    // Predicated region
    $region10: #{tpu_custom_call.1} parent=1 // pred_check
      _
    $region11: #{tpu_custom_call.1} parent=1 // pred_check_branch
      %41 = sbr.rel (0) target = $region13
    $region12: #{tpu_custom_call.1} parent=1 // pred_region
      _
    $region13: #{tpu_custom_call.1} parent=1 // pred_fallthru
      _
    // Predicated region
    $region14: #{tpu_custom_call.1} parent=1 // pred_check
      _
    $region15: #{tpu_custom_call.1} parent=1 // pred_check_branch
      %43 = sbr.rel (0) target = $region17
    $region16: #{tpu_custom_call.1} parent=1 // pred_region
      %s45 = ssub.s32 1024, 1024
      %46 = vsyncadd [#allocation6], %s45
      %s47 = sshll.u32 [#allocation7], 4
      %s48 = int_to_ptr.vmem [resolvable:$true] %s47
      %53 = dma.hbm_to_vmem [thread:$0]  %s3, 1024, %s48, [#allocation6], 64, 64, 4
    $region17: #{tpu_custom_call.1} parent=1 // pred_fallthru
      _
    // Predicated region
    $region18: #{tpu_custom_call.1} parent=1 // pred_check
      _
    $region19: #{tpu_custom_call.1} parent=1 // pred_check_branch
      %55 = sbr.rel (0) target = $region21
    $region20: #{tpu_custom_call.1} parent=1 // pred_region
      _
    $region21: #{tpu_custom_call.1} parent=1 // pred_fallthru
      _
    // Predicated region
    $region22: #{tpu_custom_call.1} parent=1 // pred_check
      _
    $region23: #{tpu_custom_call.1} parent=1 // pred_check_branch
      %57 = sbr.rel (0) target = $region25
    $region24: #{tpu_custom_call.1} parent=1 // pred_region
      %58 = dma.done [#allocation3], 384
    $region25: #{tpu_custom_call.1} parent=1 // pred_fallthru
      _
    // Predicated region
    $region26: #{tpu_custom_call.1} parent=1 // pred_check
      _
    $region27: #{tpu_custom_call.1} parent=1 // pred_check_branch
      %60 = sbr.rel (0) target = $region29
    $region28: #{tpu_custom_call.1} parent=1 // pred_region
      %61 = dma.done [#allocation6], 1024
    $region29: #{tpu_custom_call.1} parent=1 // pred_fallthru
      _
    // Predicated region
    $region30: #{tpu_custom_call.1} parent=1 // pred_check
      _
    $region31: #{tpu_custom_call.1} parent=1 // pred_check_branch
      %63 = sbr.rel (0) target = $region33
    $region32: #{tpu_custom_call.1} parent=1 // pred_region
      %64 = dma.done [#allocation6], 1024
    $region33: #{tpu_custom_call.1} parent=1 // pred_fallthru
      _
    %v66 = vld [vmem:[#allocation2] sm:$0xf]
    %v67 = vld [vmem:[#allocation2 + $0x4] sm:$0xf]
    %v68 = vld [vmem:[#allocation2 + $0x8] sm:$0xf]
    %v69 = vld [vmem:[#allocation2 + $0xc] sm:$0xf]
    %v70 = vld [vmem:[#allocation2 + $0x10] sm:$0xf]
    %v71 = vld [vmem:[#allocation2 + $0x14] sm:$0xf]
    %v72 = vld [vmem:[#allocation5] sm:$0xf]
    %v73 = vld [vmem:[#allocation5 + $0x4] sm:$0xf]
    %v74 = vld [vmem:[#allocation5 + $0x8] sm:$0xf]
    %v75 = vld [vmem:[#allocation5 + $0xc] sm:$0xf]
    %v76 = vld [vmem:[#allocation5 + $0x10] sm:$0xf]
    %v77 = vld [vmem:[#allocation5 + $0x14] sm:$0xf]
    %v78 = vld [vmem:[#allocation5 + $0x18] sm:$0xf]
    %v79 = vld [vmem:[#allocation5 + $0x1c] sm:$0xf]
    %v80 = vld [vmem:[#allocation5 + $0x20] sm:$0xf]
    %v81 = vld [vmem:[#allocation5 + $0x24] sm:$0xf]
    %v82 = vld [vmem:[#allocation5 + $0x28] sm:$0xf]
    %v83 = vld [vmem:[#allocation5 + $0x2c] sm:$0xf]
    %v84 = vld [vmem:[#allocation5 + $0x30] sm:$0xf]
    %v85 = vld [vmem:[#allocation5 + $0x34] sm:$0xf]
    %v86 = vld [vmem:[#allocation5 + $0x38] sm:$0xf]
    %v87 = vld [vmem:[#allocation5 + $0x3c] sm:$0xf]
    %v88 = vld [vmem:[%s2] sm:$0x1]
    %v90 = vlaneseq
    %v91 = vshrl.u32 %v90, 7
    %v92 = vsub.s32 0, %v91
    %v93 = vrot.slane %v88, %v92
    %v101 = vunpack.c.l.b16 %v66
    %v102 = vunpack.c.l.b16 %v67
    %v103 = vunpack.c.l.b16 %v68
    %v104 = vunpack.c.l.b16 %v69
    %v105 = vunpack.c.l.b16 %v70
    %v106 = vunpack.c.l.b16 %v71
    %v107 = vpack.c.b16 %v102, %v101
    %v108 = vpack.c.b16 %v104, %v103
    %v109 = vpack.c.b16 %v106, %v105
    %v129 = vunpack.c.l.b16 %v72
    %v130 = vunpack.c.l.b16 %v73
    %v131 = vunpack.c.l.b16 %v74
    %v132 = vunpack.c.l.b16 %v75
    %v133 = vunpack.c.l.b16 %v76
    %v134 = vunpack.c.l.b16 %v77
    %v135 = vunpack.c.l.b16 %v78
    %v136 = vunpack.c.l.b16 %v79
    %v137 = vunpack.c.l.b16 %v80
    %v138 = vunpack.c.l.b16 %v81
    %v139 = vunpack.c.l.b16 %v82
    %v140 = vunpack.c.l.b16 %v83
    %v141 = vunpack.c.l.b16 %v84
    %v142 = vunpack.c.l.b16 %v85
    %v143 = vunpack.c.l.b16 %v86
    %v144 = vunpack.c.l.b16 %v87
    %v145 = vpack.c.b16 %v130, %v129
    %v146 = vpack.c.b16 %v132, %v131
    %v147 = vpack.c.b16 %v134, %v133
    %v148 = vpack.c.b16 %v136, %v135
    %v149 = vpack.c.b16 %v138, %v137
    %v150 = vpack.c.b16 %v140, %v139
    %v151 = vpack.c.b16 %v142, %v141
    %v152 = vpack.c.b16 %v144, %v143
    %161 = vmatprep.subr.bf16.mxu0 0
    %162 = vmatpush1.bf16.msra.mxu0 %v145
    %163 = vmatprep.subr.bf16.mxu0 0
    %164 = vmatpush1.bf16.msra.mxu0 %v146
    %165 = vmatprep.subr.bf16.mxu0 0
    %166 = vmatpush1.bf16.msra.mxu0 %v147
    %167 = vmatprep.subr.bf16.mxu0 0
    %168 = vmatpush1.bf16.msra.mxu0 %v148
    %169 = vmatprep.subr.bf16.mxu0 0
    %170 = vmatpush1.bf16.msra.mxu0 %v149
    %171 = vmatprep.subr.bf16.mxu0 0
    %172 = vmatpush1.bf16.msra.mxu0 %v150
    %173 = vmatprep.subr.bf16.mxu0 0
    %174 = vmatpush1.bf16.msra.mxu0 %v151
    %175 = vmatprep.subr.bf16.mxu0 0
    %176 = vmatpush1.bf16.msra.mxu0 %v152
    %177 = vmatprep.subr.bf16.mxu0 0
    %178 = vmatpush1.bf16.msra.mxu0 0
    %179 = vmatprep.subr.bf16.mxu0 0
    %180 = vmatpush1.bf16.msra.mxu0 0
    %181 = vmatprep.subr.bf16.mxu0 0
    %182 = vmatpush1.bf16.msra.mxu0 0
    %183 = vmatprep.subr.bf16.mxu0 0
    %184 = vmatpush1.bf16.msra.mxu0 0
    %185 = vmatprep.subr.bf16.mxu0 0
    %186 = vmatpush1.bf16.msra.mxu0 0
    %187 = vmatprep.subr.bf16.mxu0 0
    %188 = vmatpush1.bf16.msra.mxu0 0
    %189 = vmatprep.subr.bf16.mxu0 0
    %190 = vmatpush1.bf16.msra.mxu0 0
    %191 = vmatprep.subr.bf16.mxu0 0
    %192 = vmatpush1.bf16.msra.mxu0 0
    %193 = vmatprep.mubr.bf16.mxu0 0
    %194 = vmatmul.mubr.bf16.gmra.mrb[0].mxu0 %v107
    %v195 = vpop.f32.mrb[0].mxu0
    %v196 = vadd.f32 %v93, %v195
    %v197 = vpop.f32.mrb[0].mxu0
    %v198 = vpop.f32.mrb[0].mxu0
    %v199 = vadd.f32 %v93, %v198
    %v200 = vpop.f32.mrb[0].mxu0
    %201 = vmatprep.mubr.bf16.mxu0 0
    %202 = vmatmul.mubr.bf16.gmra.mrb[0].mxu0 %v108
    %v203 = vpop.f32.mrb[0].mxu0
    %v204 = vadd.f32 %v93, %v203
    %v205 = vpop.f32.mrb[0].mxu0
    %v206 = vpop.f32.mrb[0].mxu0
    %v207 = vadd.f32 %v93, %v206
    %v208 = vpop.f32.mrb[0].mxu0
    %209 = vmatprep.mubr.bf16.mxu0 0
    %210 = vmatmul.mubr.bf16.gmra.mrb[0].mxu0 %v109
    %v211 = vpop.f32.mrb[0].mxu0
    %v212 = vadd.f32 %v93, %v211
    %v213 = vpop.f32.mrb[0].mxu0
    %v214 = vpop.f32.mrb[0].mxu0
    %v215 = vadd.f32 %v93, %v214
    %v216 = vpop.f32.mrb[0].mxu0
    %217 = vdwg.mxu0
    %v218 = vtanh.pop %v196
    %v219 = vtanh.pop %v199
    %v220 = vtanh.pop %v204
    %v221 = vtanh.pop %v207
    %v222 = vtanh.pop %v212
    %v223 = vtanh.pop %v215
    %v224 = vpack.c.bf16 %v219, %v218
    %v225 = vpack.c.bf16 %v221, %v220
    %v226 = vpack.c.bf16 %v223, %v222
    %v227 = vld [vmem:[#allocation7] sm:$0xf]
    %v228 = vld [vmem:[#allocation7 + $0x4] sm:$0xf]
    %v229 = vld [vmem:[#allocation7 + $0x8] sm:$0xf]
    %v230 = vld [vmem:[#allocation7 + $0xc] sm:$0xf]
    %v231 = vld [vmem:[#allocation7 + $0x10] sm:$0xf]
    %v232 = vld [vmem:[#allocation7 + $0x14] sm:$0xf]
    %v233 = vld [vmem:[#allocation7 + $0x18] sm:$0xf]
    %v234 = vld [vmem:[#allocation7 + $0x1c] sm:$0xf]
    %v235 = vld [vmem:[#allocation7 + $0x20] sm:$0xf]
    %v236 = vld [vmem:[#allocation7 + $0x24] sm:$0xf]
    %v237 = vld [vmem:[#allocation7 + $0x28] sm:$0xf]
    %v238 = vld [vmem:[#allocation7 + $0x2c] sm:$0xf]
    %v239 = vld [vmem:[#allocation7 + $0x30] sm:$0xf]
    %v240 = vld [vmem:[#allocation7 + $0x34] sm:$0xf]
    %v241 = vld [vmem:[#allocation7 + $0x38] sm:$0xf]
    %v242 = vld [vmem:[#allocation7 + $0x3c] sm:$0xf]
    %v243 = vld [vmem:[%s4] sm:$0x1]
    %v245 = vlaneseq
    %v246 = vshrl.u32 %v245, 7
    %v247 = vsub.s32 0, %v246
    %v248 = vrot.slane %v243, %v247
    %v266 = vunpack.c.l.b16 %v227
    %v267 = vunpack.c.l.b16 %v228
    %v268 = vunpack.c.l.b16 %v229
    %v269 = vunpack.c.l.b16 %v230
    %v270 = vunpack.c.l.b16 %v231
    %v271 = vunpack.c.l.b16 %v232
    %v272 = vunpack.c.l.b16 %v233
    %v273 = vunpack.c.l.b16 %v234
    %v274 = vunpack.c.l.b16 %v235
    %v275 = vunpack.c.l.b16 %v236
    %v276 = vunpack.c.l.b16 %v237
    %v277 = vunpack.c.l.b16 %v238
    %v278 = vunpack.c.l.b16 %v239
    %v279 = vunpack.c.l.b16 %v240
    %v280 = vunpack.c.l.b16 %v241
    %v281 = vunpack.c.l.b16 %v242
    %v282 = vpack.c.b16 %v267, %v266
    %v283 = vpack.c.b16 %v269, %v268
    %v284 = vpack.c.b16 %v271, %v270
    %v285 = vpack.c.b16 %v273, %v272
    %v286 = vpack.c.b16 %v275, %v274
    %v287 = vpack.c.b16 %v277, %v276
    %v288 = vpack.c.b16 %v279, %v278
    %v289 = vpack.c.b16 %v281, %v280
    %298 = vmatprep.subr.bf16.mxu0 0
    %299 = vmatpush1.bf16.msra.mxu0 %v282
    %300 = vmatprep.subr.bf16.mxu0 0
    %301 = vmatpush1.bf16.msra.mxu0 %v283
    %302 = vmatprep.subr.bf16.mxu0 0
    %303 = vmatpush1.bf16.msra.mxu0 %v284
    %304 = vmatprep.subr.bf16.mxu0 0
    %305 = vmatpush1.bf16.msra.mxu0 %v285
    %306 = vmatprep.subr.bf16.mxu0 0
    %307 = vmatpush1.bf16.msra.mxu0 %v286
    %308 = vmatprep.subr.bf16.mxu0 0
    %309 = vmatpush1.bf16.msra.mxu0 %v287
    %310 = vmatprep.subr.bf16.mxu0 0
    %311 = vmatpush1.bf16.msra.mxu0 %v288
    %312 = vmatprep.subr.bf16.mxu0 0
    %313 = vmatpush1.bf16.msra.mxu0 %v289
    %314 = vmatprep.subr.bf16.mxu0 0
    %315 = vmatpush1.bf16.msra.mxu0 0
    %316 = vmatprep.subr.bf16.mxu0 0
    %317 = vmatpush1.bf16.msra.mxu0 0
    %318 = vmatprep.subr.bf16.mxu0 0
    %319 = vmatpush1.bf16.msra.mxu0 0
    %320 = vmatprep.subr.bf16.mxu0 0
    %321 = vmatpush1.bf16.msra.mxu0 0
    %322 = vmatprep.subr.bf16.mxu0 0
    %323 = vmatpush1.bf16.msra.mxu0 0
    %324 = vmatprep.subr.bf16.mxu0 0
    %325 = vmatpush1.bf16.msra.mxu0 0
    %326 = vmatprep.subr.bf16.mxu0 0
    %327 = vmatpush1.bf16.msra.mxu0 0
    %328 = vmatprep.subr.bf16.mxu0 0
    %329 = vmatpush1.bf16.msra.mxu0 0
    %330 = vmatprep.mubr.bf16.mxu0 0
    %331 = vmatmul.mubr.bf16.gmra.mrb[0].mxu0 %v224
    %v332 = vpop.f32.mrb[0].mxu0
    %v333 = vadd.f32 %v248, %v332
    %v334 = vpop.f32.mrb[0].mxu0
    %v335 = vpop.f32.mrb[0].mxu0
    %v336 = vadd.f32 %v248, %v335
    %v337 = vpop.f32.mrb[0].mxu0
    %338 = vmatprep.mubr.bf16.mxu0 0
    %339 = vmatmul.mubr.bf16.gmra.mrb[0].mxu0 %v225
    %v340 = vpop.f32.mrb[0].mxu0
    %v341 = vadd.f32 %v248, %v340
    %v342 = vpop.f32.mrb[0].mxu0
    %v343 = vpop.f32.mrb[0].mxu0
    %v344 = vadd.f32 %v248, %v343
    %v345 = vpop.f32.mrb[0].mxu0
    %346 = vmatprep.mubr.bf16.mxu0 0
    %347 = vmatmul.mubr.bf16.gmra.mrb[0].mxu0 %v226
    %v348 = vpop.f32.mrb[0].mxu0
    %v349 = vadd.f32 %v248, %v348
    %v350 = vpop.f32.mrb[0].mxu0
    %v351 = vpop.f32.mrb[0].mxu0
    %v352 = vadd.f32 %v248, %v351
    %v353 = vpop.f32.mrb[0].mxu0
    %354 = vdwg.mxu0
    %v355 = vmax.f32 %v333, 0.0
    %v356 = vmax.f32 %v336, 0.0
    %v357 = vmax.f32 %v341, 0.0
    %v358 = vmax.f32 %v344, 0.0
    %v359 = vmax.f32 %v349, 0.0
    %v360 = vmax.f32 %v352, 0.0
    %v361 = vand.u32 2147483647, %v333
    %v362 = vand.u32 2147483647, %v336
    %v363 = vand.u32 2147483647, %v341
    %v364 = vand.u32 2147483647, %v344
    %v365 = vand.u32 2147483647, %v349
    %v366 = vand.u32 2147483647, %v352
    %v367 = vsub.f32 0.0, %v361
    %v368 = vsub.f32 0.0, %v362
    %v369 = vsub.f32 0.0, %v363
    %v370 = vsub.f32 0.0, %v364
    %v371 = vsub.f32 0.0, %v365
    %v372 = vsub.f32 0.0, %v366
    %v373 = vmul.f32 %v367, 1.442695
    %v374 = vpow.pop %v373
    %v375 = vmul.f32 %v368, 1.442695
    %v376 = vpow.pop %v375
    %v377 = vmul.f32 %v369, 1.442695
    %v378 = vpow.pop %v377
    %v379 = vmul.f32 %v370, 1.442695
    %v380 = vpow.pop %v379
    %v381 = vmul.f32 %v371, 1.442695
    %v382 = vpow.pop %v381
    %v383 = vmul.f32 %v372, 1.442695
    %v384 = vpow.pop %v383
    %v385 = vadd.f32 %v374, 1.0
    %v386 = vlog2.pop %v385
    %v387 = vmul.f32 %v386, 0.6931472
    %v388 = vmul.f32 -0.5, %v374
    %v389 = vadd.f32 %v388, 1.0
    %v390 = vmul.f32 %v389, %v374
    %v391 = vand.u32 2147483647, %v374
    %vm392 = vcmp.lt.f32.partialorder %v391, 0.0004427343
    %v393 = vsel %vm392, %v390, %v387
    %v394 = vadd.f32 %v376, 1.0
    %v395 = vlog2.pop %v394
    %v396 = vmul.f32 %v395, 0.6931472
    %v397 = vmul.f32 -0.5, %v376
    %v398 = vadd.f32 %v397, 1.0
    %v399 = vmul.f32 %v398, %v376
    %v400 = vand.u32 2147483647, %v376
    %vm401 = vcmp.lt.f32.partialorder %v400, 0.0004427343
    %v402 = vsel %vm401, %v399, %v396
    %v403 = vadd.f32 %v378, 1.0
    %v404 = vlog2.pop %v403
    %v405 = vmul.f32 %v404, 0.6931472
    %v406 = vmul.f32 -0.5, %v378
    %v407 = vadd.f32 %v406, 1.0
    %v408 = vmul.f32 %v407, %v378
    %v409 = vand.u32 2147483647, %v378
    %vm410 = vcmp.lt.f32.partialorder %v409, 0.0004427343
    %v411 = vsel %vm410, %v408, %v405
    %v412 = vadd.f32 %v380, 1.0
    %v413 = vlog2.pop %v412
    %v414 = vmul.f32 %v413, 0.6931472
    %v415 = vmul.f32 -0.5, %v380
    %v416 = vadd.f32 %v415, 1.0
    %v417 = vmul.f32 %v416, %v380
    %v418 = vand.u32 2147483647, %v380
    %vm419 = vcmp.lt.f32.partialorder %v418, 0.0004427343
    %v420 = vsel %vm419, %v417, %v414
    %v421 = vadd.f32 %v382, 1.0
    %v422 = vlog2.pop %v421
    %v423 = vmul.f32 %v422, 0.6931472
    %v424 = vmul.f32 -0.5, %v382
    %v425 = vadd.f32 %v424, 1.0
    %v426 = vmul.f32 %v425, %v382
    %v427 = vand.u32 2147483647, %v382
    %vm428 = vcmp.lt.f32.partialorder %v427, 0.0004427343
    %v429 = vsel %vm428, %v426, %v423
    %v430 = vadd.f32 %v384, 1.0
    %v431 = vlog2.pop %v430
    %v432 = vmul.f32 %v431, 0.6931472
    %v433 = vmul.f32 -0.5, %v384
    %v434 = vadd.f32 %v433, 1.0
    %v435 = vmul.f32 %v434, %v384
    %v436 = vand.u32 2147483647, %v384
    %vm437 = vcmp.lt.f32.partialorder %v436, 0.0004427343
    %v438 = vsel %vm437, %v435, %v432
    %v439 = vadd.f32 %v355, %v393
    %v440 = vadd.f32 %v356, %v402
    %v441 = vadd.f32 %v357, %v411
    %v442 = vadd.f32 %v358, %v420
    %v443 = vadd.f32 %v359, %v429
    %v444 = vadd.f32 %v360, %v438
    %v445 = vpack.c.bf16 %v440, %v439
    %v446 = vpack.c.bf16 %v442, %v441
    %v447 = vpack.c.bf16 %v444, %v443
    %v451 = vunpack.c.l.b16 %v445
    %v452 = vunpack.c.h.b16 %v445
    %v453 = vunpack.c.l.b16 %v446
    %v454 = vunpack.c.h.b16 %v446
    %v455 = vunpack.c.l.b16 %v447
    %v456 = vunpack.c.h.b16 %v447
    %v457 = vpack.c.b16 %v451, %v451
    %v458 = vpack.c.b16 %v452, %v452
    %v459 = vpack.c.b16 %v453, %v453
    %v460 = vpack.c.b16 %v454, %v454
    %v461 = vpack.c.b16 %v455, %v455
    %v462 = vpack.c.b16 %v456, %v456
    %469 = vst [vmem:[#allocation8] sm:$0xf] %v457
    %470 = vst [vmem:[#allocation8 + $0x4] sm:$0xf] %v458
    %471 = vst [vmem:[#allocation8 + $0x8] sm:$0xf] %v459
    %472 = vst [vmem:[#allocation8 + $0xc] sm:$0xf] %v460
    %473 = vst [vmem:[#allocation8 + $0x10] sm:$0xf] %v461
    %474 = vst [vmem:[#allocation8 + $0x14] sm:$0xf] %v462
    %v475 = vadd.f32 %v439, %v441
    %v476 = vadd.f32 %v475, %v443
    %v477 = vadd.f32 %v440, %v442
    %v478 = vadd.f32 %v477, %v444
    %479 = vst [vmem:[#allocation9] sm:$0xff] %v476
    %480 = vst [vmem:[#allocation9 + $0x8] sm:$0xff] %v478
    // Predicated region
    $region34: #{tpu_custom_call.1} parent=1 // pred_check
      _
    $region35: #{tpu_custom_call.1} parent=1 // pred_check_branch
      %482 = sbr.rel (0) target = $region37
    $region36: #{tpu_custom_call.1} parent=1 // pred_region
      %s484 = ssub.s32 384, 384
      %485 = vsyncadd [#allocation4], %s484
      %s486 = sshll.u32 [#allocation8], 4
      %s487 = int_to_ptr.vmem [resolvable:$true] %s486
      %492 = dma.vmem_to_hbm [thread:$0]  %s487, 384, %s5, [#allocation4], 64, 64, 4
    $region37: #{tpu_custom_call.1} parent=1 // pred_fallthru
      _
    // Predicated region
    $region38: #{tpu_custom_call.1} parent=1 // pred_check
      _
    $region39: #{tpu_custom_call.1} parent=1 // pred_check_branch
      %494 = sbr.rel (0) target = $region41
    $region40: #{tpu_custom_call.1} parent=1 // pred_region
      %s496 = ssub.s32 256, 256
      %497 = vsyncadd [#allocation10], %s496
      %s498 = sshll.u32 [#allocation9], 4
      %s499 = int_to_ptr.vmem [resolvable:$true] %s498
      %504 = dma.vmem_to_hbm [thread:$0]  %s499, 256, %s6, [#allocation10], 128, 128, 8
    $region41: #{tpu_custom_call.1} parent=1 // pred_fallthru
      _
    // Predicated region
    $region42: #{tpu_custom_call.1} parent=1 // pred_check
      _
    $region43: #{tpu_custom_call.1} parent=1 // pred_check_branch
      %506 = sbr.rel (0) target = $region45
    $region44: #{tpu_custom_call.1} parent=1 // pred_region
      %507 = dma.done [#allocation4], 384
    $region45: #{tpu_custom_call.1} parent=1 // pred_fallthru
      _
    // Predicated region
    $region46: #{tpu_custom_call.1} parent=1 // pred_check
      _
    $region47: #{tpu_custom_call.1} parent=1 // pred_check_branch
      %509 = sbr.rel (0) target = $region49
    $region48: #{tpu_custom_call.1} parent=1 // pred_region
      %510 = dma.done [#allocation10], 256
    $region49: #{tpu_custom_call.1} parent=1 // pred_fallthru
      _
    %511 = vsyncpa [#allocation3], 1
    %512 = vsyncpa [#allocation6], 1
    %513 = vsyncpa [#allocation4], 1
    %514 = vsyncpa [#allocation10], 1

</llo_original>
